<compile_context>
chip_gen: v7x
topology: tpu7x:2x2x1
jax: 0.10.0
libtpu: 0.0.40
codegen_flags: <defaults>
</compile_context>

<pallas_src>
import functools

import jax
import jax.numpy as jnp
from jax.experimental import pallas as pl
from jax.experimental.pallas import tpu as pltpu


def _vmem_limit_bytes(estimate):
    # Explicit scoped-VMEM budget (v7x default is 32 MiB of only 64 MiB physical).
    # 2x headroom for double buffering; clamped to a value valid on every generation.
    return int(min(64 * 1024 * 1024, max(16 * 1024 * 1024, 2 * int(estimate))))


# ----------------------------------------------------------------------------
# Kernel 1: fused textual+visual two-layer MLP projection (Linear->LeakyReLU->Linear)
#           bf16 matmul operands, f32 accumulate / bias / activation.
# ----------------------------------------------------------------------------
def _dual_mlp_kernel(xt_ref, xv_ref, wt1_ref, bt1_ref, wt2_ref, bt2_ref,
                     wv1_ref, bv1_ref, wv2_ref, bv2_ref, ot_ref, ov_ref):
    def proj(x, w1, b1, w2, b2):
        h = jnp.dot(x, w1, preferred_element_type=jnp.float32) + b1
        h = jnp.where(h >= 0.0, h, 0.01 * h)  # nn.LeakyReLU default slope
        # TODO(synk): nn.Dropout modeled in eval mode (identity); training-mode RNG dropout omitted.
        return jnp.dot(h.astype(jnp.bfloat16), w2, preferred_element_type=jnp.float32) + b2

    ot_ref[...] = proj(xt_ref[...], wt1_ref[...], bt1_ref[...], wt2_ref[...], bt2_ref[...])
    ov_ref[...] = proj(xv_ref[...], wv1_ref[...], bv1_ref[...], wv2_ref[...], bv2_ref[...])


def mlp_project_both(xt, xv, wt1, bt1, wt2, bt2, wv1, bv1, wv2, bv2, *, block_rows=512):
    m, kt = xt.shape
    kv = xv.shape[1]
    ht, hv = wt1.shape[1], wv1.shape[1]
    e = wt2.shape[1]
    tm = min(block_rows, m)  # bigger row tile (mem-bound roofline); weights stay resident
    grid = (pl.cdiv(m, tm),)

    bt1r, bt2r = bt1.reshape(1, ht).astype(jnp.float32), bt2.reshape(1, e).astype(jnp.float32)
    bv1r, bv2r = bv1.reshape(1, hv).astype(jnp.float32), bv2.reshape(1, e).astype(jnp.float32)
    # bf16 operands halve HBM + VMEM traffic; MXU accumulates in f32.
    xt_b, xv_b = xt.astype(jnp.bfloat16), xv.astype(jnp.bfloat16)
    wt1_b, wt2_b = wt1.astype(jnp.bfloat16), wt2.astype(jnp.bfloat16)
    wv1_b, wv2_b = wv1.astype(jnp.bfloat16), wv2.astype(jnp.bfloat16)

    est = (2 * tm * (kt + kv) * 2                           # double-buffered bf16 input tiles
           + (kt * ht + ht * e + kv * hv + hv * e) * 2      # resident bf16 weights
           + 2 * 2 * tm * e * 4)                            # double-buffered f32 output tiles
    return pl.pallas_call(
        _dual_mlp_kernel,
        out_shape=(jax.ShapeDtypeStruct((m, e), jnp.float32),
                   jax.ShapeDtypeStruct((m, e), jnp.float32)),
        grid=grid,
        in_specs=[
            pl.BlockSpec((tm, kt), lambda i: (i, 0)),
            pl.BlockSpec((tm, kv), lambda i: (i, 0)),
            pl.BlockSpec((kt, ht), lambda i: (0, 0)),
            pl.BlockSpec((1, ht), lambda i: (0, 0)),
            pl.BlockSpec((ht, e), lambda i: (0, 0)),
            pl.BlockSpec((1, e), lambda i: (0, 0)),
            pl.BlockSpec((kv, hv), lambda i: (0, 0)),
            pl.BlockSpec((1, hv), lambda i: (0, 0)),
            pl.BlockSpec((hv, e), lambda i: (0, 0)),
            pl.BlockSpec((1, e), lambda i: (0, 0)),
        ],
        out_specs=(pl.BlockSpec((tm, e), lambda i: (i, 0)),
                   pl.BlockSpec((tm, e), lambda i: (i, 0))),
        compiler_params=pltpu.CompilerParams(
            dimension_semantics=("parallel",),
            vmem_limit_bytes=_vmem_limit_bytes(est)),
    )(xt_b, xv_b, wt1_b, bt1r, wt2_b, bt2r, wv1_b, bv1r, wv2_b, bv2r)
    # TODO(synk): fuse the feature-row gathers into this kernel via PrefetchScalarGridSpec
    # (all_idx in SMEM + pl.Element(1) row-gather index_map) to drop an HBM round trip
    # at production feature dims.


# ----------------------------------------------------------------------------
# Kernel 2: adjacent-pair distance correlations, one modality per grid step
#           (grid=(4,) "parallel" -> megacore on v7x), rolling 2-matrix window.
# ----------------------------------------------------------------------------
def _dcor_modality_kernel(x_ref, o_ref, *, n_factors):
    x_full = x_ref[0]                       # (B, E) for this modality
    nb = x_full.shape[0]
    n = jnp.float32(nb)
    d = x_full.shape[1] // n_factors

    row_ids = jax.lax.broadcasted_iota(jnp.int32, (nb, nb), 0)
    col_ids = jax.lax.broadcasted_iota(jnp.int32, (nb, nb), 1)
    eye = row_ids == col_ids

    def centered_distance(x):
        gram = jax.lax.dot_general(x, x, (((1,), (1,)), ((), ())),
                                   preferred_element_type=jnp.float32)     # x @ x.T
        # squared row norms = diag(gram); extract via mask + reductions (no extra
        # matmul, no transpose -> pure VPU/XLU work).
        diag = jnp.where(eye, gram, 0.0)
        r_col = jnp.sum(diag, axis=1, keepdims=True)                        # (B, 1)
        r_row = jnp.sum(diag, axis=0, keepdims=True)                        # (1, B)
        dmat = jnp.sqrt(jnp.maximum(r_col - 2.0 * gram + r_row, 0.0) + 1e-8)
        dmat = (dmat - jnp.mean(dmat, axis=0, keepdims=True)
                - jnp.mean(dmat, axis=1, keepdims=True) + jnp.mean(dmat))
        return dmat
        # TODO(synk): tile the B dimension (two-pass row/col means) if production B
        # grows so a single B x B f32 dmat no longer fits v7x VMEM.

    def dcov(a, b):
        return jnp.sqrt(jnp.maximum(jnp.sum(a * b) / (n * n), 0.0) + 1e-8)

    # Rolling window: only 2 centered distance matrices live at any time.
    prev = centered_distance(x_full[:, 0:d])
    prev_var = dcov(prev, prev)
    total = jnp.float32(0.0)
    # TODO(synk): convert this unrolled pair loop to lax.fori_loop(unroll=True) if
    # n_factors grows large enough that the unrolled body inflates vreg pressure.
    for i in range(n_factors - 1):
        cur = centered_distance(x_full[:, (i + 1) * d:(i + 2) * d])
        cur_var = dcov(cur, cur)
        dcov12 = dcov(prev, cur)
        total = total + dcov12 / (jnp.sqrt(jnp.maximum(prev_var * cur_var, 0.0)) + 1e-10)
        prev, prev_var = cur, cur_var

    o_ref[...] = jnp.reshape(total, (1, 1))


def distance_correlation_sum(users, pos_items, textual_p, visual_p, *, n_factors):
    b, e = users.shape
    d = e // n_factors
    # modality order follows the PyTorch loop (visual, textual, user, item);
    # the sum is order-independent.
    stacked = jnp.stack([visual_p, textual_p, users, pos_items], axis=0)    # (4, B, E)

    est = 2 * b * e * 4 + 6 * b * b * 4            # input double-buffer + ~3 BxB intermediates
    cost = pl.CostEstimate(
        flops=4 * n_factors * (2 * b * b * d + 12 * b * b),
        transcendentals=4 * n_factors * 2 * b * b,
        bytes_accessed=4 * b * e * 4 + 4 * 4)
    partial = pl.pallas_call(
        functools.partial(_dcor_modality_kernel, n_factors=n_factors),
        out_shape=jax.ShapeDtypeStruct((4, 1), jnp.float32),
        grid=(4,),
        in_specs=[pl.BlockSpec((1, b, e), lambda m: (m, 0, 0))],
        out_specs=pl.BlockSpec((1, 1), lambda m: (m, 0)),
        compiler_params=pltpu.CompilerParams(
            dimension_semantics=("parallel",),
            vmem_limit_bytes=_vmem_limit_bytes(est)),
        cost_estimate=cost,
    )(stacked)
    return jnp.sum(partial)


# ----------------------------------------------------------------------------
# Kernel 3: per-replication-block attention-weighted scores, summed over factors,
#           stored lane-dense as one (1, B) row per block.
# ----------------------------------------------------------------------------
def _factor_score_kernel(u_ref, it_ref, tx_ref, vs_ref, wmod_ref, sel_ref, ba1_ref,
                         wa2_ref, o_ref, *, n_factors):
    u, it = u_ref[...], it_ref[...]
    tx, vs = tx_ref[...], vs_ref[...]
    tb, e = u.shape
    d = e // n_factors

    def softplus(x):
        return jnp.maximum(x, 0.0) + jnp.log(1.0 + jnp.exp(-jnp.abs(x)))

    # F.normalize(cat([u, it, tx, vs], 1), p=2, dim=1) folded into the first Linear.
    # All n_factors attention pre-activations from 4 wide matmuls against host-side
    # block-diagonal weights (vs 4*n_factors tiny (TB,d)x(d,3) matmuls).
    sq = u * u + it * it + tx * tx + vs * vs                                  # (TB, E)
    nsq = jnp.dot(sq, sel_ref[...], preferred_element_type=jnp.float32)       # (TB, 3*nf)
    inv_norm = 1.0 / jnp.maximum(jnp.sqrt(nsq), 1e-12)                        # F.normalize eps
    pre = (jnp.dot(u, wmod_ref[0 * e:1 * e, :], preferred_element_type=jnp.float32)
           + jnp.dot(it, wmod_ref[1 * e:2 * e, :], preferred_element_type=jnp.float32)
           + jnp.dot(tx, wmod_ref[2 * e:3 * e, :], preferred_element_type=jnp.float32)
           + jnp.dot(vs, wmod_ref[3 * e:4 * e, :], preferred_element_type=jnp.float32))
    hidden = jnp.tanh(pre * inv_norm + ba1_ref[...])                          # (TB, 3*nf)

    total = jnp.zeros((tb, 1), jnp.float32)
    for i in range(n_factors):
        c = 3 * i
        h0 = hidden[:, c:c + 1]
        h1 = hidden[:, c + 1:c + 2]
        h2 = hidden[:, c + 2:c + 3]

        # (3,3) second attention layer on the VPU with SMEM scalars (an MXU pass at
        # K=N=3 would be pure drain overhead).
        def w2(k, j):
            return wa2_ref[i * 9 + k * 3 + j]

        l0 = h0 * w2(0, 0) + h1 * w2(1, 0) + h2 * w2(2, 0)
        l1 = h0 * w2(0, 1) + h1 * w2(1, 1) + h2 * w2(2, 1)
        l2 = h0 * w2(0, 2) + h1 * w2(1, 2) + h2 * w2(2, 2)
        mx = jnp.maximum(jnp.maximum(l0, l1), l2)
        e0 = jnp.exp(l0 - mx)
        e1 = jnp.exp(l1 - mx)
        e2 = jnp.exp(l2 - mx)
        inv_den = 1.0 / (e0 + e1 + e2)            # exact softmax (numerical parity)

        sl = slice(i * d, (i + 1) * d)
        ui = u[:, sl]
        s_item = softplus(jnp.sum(ui * it[:, sl], axis=1, keepdims=True))
        s_text = softplus(jnp.sum(ui * tx[:, sl], axis=1, keepdims=True))
        s_vis = softplus(jnp.sum(ui * vs[:, sl], axis=1, keepdims=True))
        # weight column 0 -> item, 1 -> text, 2 -> visual (matches the PyTorch pairing)
        total = total + (e1 * s_text + e2 * s_vis + e0 * s_item) * inv_den

    # lane-dense (1, TB) store: relayout the (TB, 1) factor-sum column with a
    # diag-masked broadcast + sublane reduce (no reshape/transpose lowering risk).
    row_ids = jax.lax.broadcasted_iota(jnp.int32, (tb, tb), 0)
    col_ids = jax.lax.broadcasted_iota(jnp.int32, (tb, tb), 1)
    o_ref[...] = jnp.sum(jnp.where(row_ids == col_ids,
                                   jnp.broadcast_to(total, (tb, tb)), 0.0),
                         axis=0, keepdims=True)


def _pack_attention_weights(wa1, ba1, wa2, n_factors, d):
    """Repack per-factor attention params into block-diagonal per-modality matrices."""
    e = n_factors * d
    wmod = jnp.zeros((4, e, 3 * n_factors), jnp.float32)
    for mdl in range(4):
        for i in range(n_factors):
            blk = wa1[i, mdl * d:(mdl + 1) * d, :]                       # (d, 3)
            wmod = wmod.at[mdl, i * d:(i + 1) * d, 3 * i:3 * i + 3].set(blk)
    wmod = wmod.reshape(4 * e, 3 * n_factors)                            # rows: [u|it|tx|vs]
    sel = jnp.zeros((e, 3 * n_factors), jnp.float32)
    for i in range(n_factors):
        sel = sel.at[i * d:(i + 1) * d, 3 * i:3 * i + 3].set(1.0)
    ba1_row = ba1.reshape(1, 3 * n_factors)
    wa2_flat = wa2.reshape(-1)                                           # [i, k_in, j_out]
    return wmod, sel, ba1_row, wa2_flat


def factor_row_scores(users, items, textual_f, visual_f, wmod, sel, ba1_row, wa2_flat,
                      *, n_factors, num_neg):
    b, e = users.shape
    m = items.shape[0]
    assert m == b * (num_neg + 1)
    est = (4 * 2 * b * e * 4 + (4 * e + e + 1) * 3 * n_factors * 4 + 2 * b * 4 + 4096)
    return pl.pallas_call(
        functools.partial(_factor_score_kernel, n_factors=n_factors),
        out_shape=jax.ShapeDtypeStruct((num_neg + 1, b), jnp.float32),
        grid=(num_neg + 1,),
        in_specs=[
            pl.BlockSpec((b, e), lambda r: (0, 0)),   # users: resident (replaces users.repeat)
            pl.BlockSpec((b, e), lambda r: (r, 0)),   # items block r
            pl.BlockSpec((b, e), lambda r: (r, 0)),   # textual block r
            pl.BlockSpec((b, e), lambda r: (r, 0)),   # visual block r
            pl.BlockSpec((4 * e, 3 * n_factors), lambda r: (0, 0)),   # block-diag W1 per modality
            pl.BlockSpec((e, 3 * n_factors), lambda r: (0, 0)),       # nsq selector
            pl.BlockSpec((1, 3 * n_factors), lambda r: (0, 0)),       # attention bias
            pl.BlockSpec(memory_space=pltpu.MemorySpace.SMEM),        # wa2 scalars (VPU path)
        ],
        out_specs=pl.BlockSpec((1, b), lambda r: (r, 0)),
        compiler_params=pltpu.CompilerParams(
            dimension_semantics=("parallel",),
            vmem_limit_bytes=_vmem_limit_bytes(est)),
    )(users, items, textual_f, visual_f, wmod, sel, ba1_row, wa2_flat)


# ----------------------------------------------------------------------------
# DMRL forward (glue in plain JAX; heavy compute via the fused kernels above)
# ----------------------------------------------------------------------------
def dmrl_forward(params, user_positive_items_pairs, negative_samples,
                 *, n_factors, num_neg, batch_size, decay_r, decay_c):
    user_emb = params["user_embeddings"]
    item_emb = params["item_embeddings"]
    text_feat = params["textualfeatures"]
    img_feat = params["imagefeatures"]

    users_idx = user_positive_items_pairs[:, 0]
    pos_idx = user_positive_items_pairs[:, 1]
    neg_idx = negative_samples.reshape(-1)

    users = user_emb[users_idx]                                    # (B, E)
    pos_items = item_emb[pos_idx]                                  # (B, E)
    neg_items = item_emb[neg_idx]                                  # (B*num_neg, E)
    items = jnp.concatenate([pos_items, neg_items], axis=0)        # (M, E)

    all_idx = jnp.concatenate([pos_idx, neg_idx], axis=0)          # pos rows come first
    # TODO(synk): feature gathers stay in JAX; fusing them into the MLP kernel via
    # scalar-prefetch row gathers would remove an HBM round trip at production sizes.
    textual_f, visual_f = mlp_project_both(
        text_feat[all_idx], img_feat[all_idx],
        params["wt1"], params["bt1"], params["wt2"], params["bt2"],
        params["wv1"], params["bv1"], params["wv2"], params["bv2"])

    # positive-row projections (first B rows of the concat, by construction of all_idx)
    pos_i_f = textual_f[:batch_size]
    pos_i_v = visual_f[:batch_size]

    # one launch (grid over modalities) for all 4*(n_factors-1) adjacent-pair dcors
    cor_sum = distance_correlation_sum(users, pos_items, pos_i_f, pos_i_v,
                                       n_factors=n_factors)
    cor_loss = cor_sum / ((n_factors + 1.0) * n_factors / 2.0)

    d = users.shape[1] // n_factors
    wmod, sel, ba1_row, wa2_flat = _pack_attention_weights(
        params["wa1"], params["ba1"], params["wa2"], n_factors, d)

    # one launch for all attention-weighted factor-score row sums -> (num_neg+1, B)
    row_scores = factor_row_scores(users, items, textual_f, visual_f,
                                   wmod, sel, ba1_row, wa2_flat,
                                   n_factors=n_factors, num_neg=num_neg)
    pos_score = row_scores[0]                                      # (B,)
    neg_sum = row_scores[1:].reshape(-1).reshape(batch_size, num_neg)
    negative_score = jnp.max(neg_sum, axis=1)                      # (B,)
    loss = jnp.sum(jax.nn.softplus(-(pos_score - negative_score)))

    # sum(pos_*^2) + sum(neg_*^2) == sum over the full concatenated projections
    regularizer = (jnp.sum(users ** 2) + jnp.sum(pos_items ** 2) + jnp.sum(neg_items ** 2)
                   + jnp.sum(visual_f ** 2) + jnp.sum(textual_f ** 2)) / batch_size

    return loss + decay_r * regularizer + decay_c * cor_loss


# ----------------------------------------------------------------------------
# Deterministic parameter construction (synthetic; shapes follow DMRL.__init__)
# ----------------------------------------------------------------------------
def init_params(key, *, n_users, n_items, embed_dim, n_factors,
                text_dim, img_dim, hidden_a, hidden_b):
    keys = jax.random.split(key, 12)

    def xavier(k, shape):
        limit = jnp.sqrt(6.0 / (shape[0] + shape[1]))
        return jax.random.uniform(k, shape, jnp.float32, -limit, limit)

    d = embed_dim // n_factors
    # NOTE: the PyTorch _create_weight builds freshly-random nn.Linear layers on each
    # call; here we use fixed deterministic per-factor attention parameters instead.
    wa1 = jnp.stack([xavier(jax.random.fold_in(keys[6], i), (4 * d, 3))
                     for i in range(n_factors)])
    ba1 = 0.1 * jax.random.normal(keys[7], (n_factors, 3), jnp.float32)
    wa2 = jnp.stack([xavier(jax.random.fold_in(keys[8], i), (3, 3))
                     for i in range(n_factors)])

    return {
        "user_embeddings": xavier(keys[0], (n_users, embed_dim)),
        "item_embeddings": xavier(keys[1], (n_items, embed_dim)),
        "wt1": xavier(keys[2], (text_dim, 2 * hidden_b)),
        "bt1": 0.01 * jax.random.normal(keys[9], (2 * hidden_b,), jnp.float32),
        "wt2": xavier(keys[3], (2 * hidden_b, embed_dim)),
        "bt2": 0.01 * jax.random.normal(keys[10], (embed_dim,), jnp.float32),
        "wv1": xavier(keys[4], (img_dim, 2 * hidden_a)),
        "bv1": 0.01 * jax.random.normal(keys[11], (2 * hidden_a,), jnp.float32),
        "wv2": xavier(keys[5], (2 * hidden_a, embed_dim)),
        "bv2": jnp.zeros((embed_dim,), jnp.float32),
        "wa1": wa1, "ba1": ba1, "wa2": wa2,
    }


if __name__ == "__main__":
    # small, TPU-friendly shapes consistent with the module
    n_users, n_items = 32, 64
    embed_dim, n_factors = 32, 4          # factor chunk size d = 8
    batch_size, num_neg = 8, 4            # M = batch * (num_neg + 1) = 40
    text_dim, img_dim = 48, 64
    hidden_a = hidden_b = 16              # MLP hidden = 2 * 16 = 32

    key = jax.random.PRNGKey(0)
    k_in, k_param = jax.random.split(key)
    k1, k2, k3, k4, k5 = jax.random.split(k_in, 5)

    textualfeatures = jax.random.normal(k1, (n_items, text_dim), jnp.float32)
    imagefeatures = jax.random.normal(k2, (n_items, img_dim), jnp.float32)
    user_positive_items_pairs = jnp.stack(
        [jax.random.randint(k3, (batch_size,), 0, n_users),
         jax.random.randint(k4, (batch_size,), 0, n_items)], axis=1).astype(jnp.int32)
    negative_samples = jax.random.randint(k5, (batch_size, num_neg), 0, n_items).astype(jnp.int32)

    params = init_params(k_param, n_users=n_users, n_items=n_items,
                         embed_dim=embed_dim, n_factors=n_factors,
                         text_dim=text_dim, img_dim=img_dim,
                         hidden_a=hidden_a, hidden_b=hidden_b)
    params["textualfeatures"] = textualfeatures
    params["imagefeatures"] = imagefeatures

    all_loss = dmrl_forward(params, user_positive_items_pairs, negative_samples,
                            n_factors=n_factors, num_neg=num_neg,
                            batch_size=batch_size, decay_r=1e-4, decay_c=1e-3)
    jax.block_until_ready(all_loss)
    assert all_loss.shape == () and jnp.isfinite(all_loss)
    print("KERNEL_OK")
</pallas_src>

<mosaic_0001>
module attributes {stable_mosaic.version = 11 : i64} {
  func.func @_dual_mlp_kernel(%arg0: i32, %arg1: memref<40x48xbf16, #tpu.memory_space<vmem>>, %arg2: memref<40x64xbf16, #tpu.memory_space<vmem>>, %arg3: memref<48x32xbf16, #tpu.memory_space<vmem>>, %arg4: memref<1x32xf32, #tpu.memory_space<vmem>>, %arg5: memref<32x32xbf16, #tpu.memory_space<vmem>>, %arg6: memref<1x32xf32, #tpu.memory_space<vmem>>, %arg7: memref<64x32xbf16, #tpu.memory_space<vmem>>, %arg8: memref<1x32xf32, #tpu.memory_space<vmem>>, %arg9: memref<32x32xbf16, #tpu.memory_space<vmem>>, %arg10: memref<1x32xf32, #tpu.memory_space<vmem>>, %arg11: memref<40x32xf32, #tpu.memory_space<vmem>>, %arg12: memref<40x32xf32, #tpu.memory_space<vmem>>) attributes {dimension_semantics = [#tpu.dimension_semantics<parallel>], iteration_bounds = array<i64: 1>, scalar_prefetch = 0 : i64, scratch_operands = 0 : i64, tpu.core_type = #tpu.core_type<tc>, window_params = [{transform_indices = @transform_0, window_bounds = array<i64: 40, 48>}, {transform_indices = @transform_1, window_bounds = array<i64: 40, 64>}, {pipeline_mode = #tpu.pipeline_mode<synchronous>, transform_indices = @transform_2, window_bounds = array<i64: 48, 32>}, {pipeline_mode = #tpu.pipeline_mode<synchronous>, transform_indices = @transform_3, window_bounds = array<i64: 1, 32>}, {pipeline_mode = #tpu.pipeline_mode<synchronous>, transform_indices = @transform_4, window_bounds = array<i64: 32, 32>}, {pipeline_mode = #tpu.pipeline_mode<synchronous>, transform_indices = @transform_5, window_bounds = array<i64: 1, 32>}, {pipeline_mode = #tpu.pipeline_mode<synchronous>, transform_indices = @transform_6, window_bounds = array<i64: 64, 32>}, {pipeline_mode = #tpu.pipeline_mode<synchronous>, transform_indices = @transform_7, window_bounds = array<i64: 1, 32>}, {pipeline_mode = #tpu.pipeline_mode<synchronous>, transform_indices = @transform_8, window_bounds = array<i64: 32, 32>}, {pipeline_mode = #tpu.pipeline_mode<synchronous>, transform_indices = @transform_9, window_bounds = array<i64: 1, 32>}, {transform_indices = @transform_10, window_bounds = array<i64: 40, 32>}, {transform_indices = @transform_11, window_bounds = array<i64: 40, 32>}]} {
    %c0 = arith.constant 0 : index
    %c0_0 = arith.constant 0 : index
    %0 = vector.load %arg1[%c0, %c0_0] : memref<40x48xbf16, #tpu.memory_space<vmem>>, vector<40x48xbf16>
    %c0_1 = arith.constant 0 : index
    %c0_2 = arith.constant 0 : index
    %1 = vector.load %arg3[%c0_1, %c0_2] : memref<48x32xbf16, #tpu.memory_space<vmem>>, vector<48x32xbf16>
    %c0_3 = arith.constant 0 : index
    %c0_4 = arith.constant 0 : index
    %2 = vector.load %arg4[%c0_3, %c0_4] : memref<1x32xf32, #tpu.memory_space<vmem>>, vector<1x32xf32>
    %c0_5 = arith.constant 0 : index
    %c0_6 = arith.constant 0 : index
    %3 = vector.load %arg5[%c0_5, %c0_6] : memref<32x32xbf16, #tpu.memory_space<vmem>>, vector<32x32xbf16>
    %c0_7 = arith.constant 0 : index
    %c0_8 = arith.constant 0 : index
    %4 = vector.load %arg6[%c0_7, %c0_8] : memref<1x32xf32, #tpu.memory_space<vmem>>, vector<1x32xf32>
    %cst = arith.constant dense<0.000000e+00> : vector<40x32xf32>
    %5 = tpu.matmul %0, %1, %cst {dimension_numbers = #tpu.dot_dimension_numbers<[1], [0], [0], [1], [0, 0, 1, 1], [], []>} : vector<40x48xbf16>, vector<48x32xbf16>, vector<40x32xf32> -> vector<40x32xf32>
    %6 = vector.broadcast %2 : vector<1x32xf32> to vector<40x32xf32>
    %7 = arith.addf %5, %6 : vector<40x32xf32>
    %cst_9 = arith.constant 0.000000e+00 : f32
    %8 = vector.broadcast %cst_9 : f32 to vector<40x32xf32>
    %9 = arith.cmpf oge, %7, %8 : vector<40x32xf32>
    %cst_10 = arith.constant 0.00999999977 : f32
    %10 = vector.broadcast %cst_10 : f32 to vector<40x32xf32>
    %11 = arith.mulf %10, %7 : vector<40x32xf32>
    %12 = arith.select %9, %7, %11 : vector<40x32xi1>, vector<40x32xf32>
    %13 = arith.truncf %12 : vector<40x32xf32> to vector<40x32xbf16>
    %cst_11 = arith.constant dense<0.000000e+00> : vector<40x32xf32>
    %14 = tpu.matmul %13, %3, %cst_11 {dimension_numbers = #tpu.dot_dimension_numbers<[1], [0], [0], [1], [0, 0, 1, 1], [], []>} : vector<40x32xbf16>, vector<32x32xbf16>, vector<40x32xf32> -> vector<40x32xf32>
    %15 = vector.broadcast %4 : vector<1x32xf32> to vector<40x32xf32>
    %16 = arith.addf %14, %15 : vector<40x32xf32>
    %c0_12 = arith.constant 0 : index
    %c0_13 = arith.constant 0 : index
    %17 = vector.load %arg11[%c0_12, %c0_13] : memref<40x32xf32, #tpu.memory_space<vmem>>, vector<40x32xf32>
    tpu.vector_store %arg11[%c0_12, %c0_13], %16 {strides = array<i32>} : memref<40x32xf32, #tpu.memory_space<vmem>>, vector<40x32xf32>,
    %c0_14 = arith.constant 0 : index
    %c0_15 = arith.constant 0 : index
    %18 = vector.load %arg2[%c0_14, %c0_15] : memref<40x64xbf16, #tpu.memory_space<vmem>>, vector<40x64xbf16>
    %c0_16 = arith.constant 0 : index
    %c0_17 = arith.constant 0 : index
    %19 = vector.load %arg7[%c0_16, %c0_17] : memref<64x32xbf16, #tpu.memory_space<vmem>>, vector<64x32xbf16>
    %c0_18 = arith.constant 0 : index
    %c0_19 = arith.constant 0 : index
    %20 = vector.load %arg8[%c0_18, %c0_19] : memref<1x32xf32, #tpu.memory_space<vmem>>, vector<1x32xf32>
    %c0_20 = arith.constant 0 : index
    %c0_21 = arith.constant 0 : index
    %21 = vector.load %arg9[%c0_20, %c0_21] : memref<32x32xbf16, #tpu.memory_space<vmem>>, vector<32x32xbf16>
    %c0_22 = arith.constant 0 : index
    %c0_23 = arith.constant 0 : index
    %22 = vector.load %arg10[%c0_22, %c0_23] : memref<1x32xf32, #tpu.memory_space<vmem>>, vector<1x32xf32>
    %cst_24 = arith.constant dense<0.000000e+00> : vector<40x32xf32>
    %23 = tpu.matmul %18, %19, %cst_24 {dimension_numbers = #tpu.dot_dimension_numbers<[1], [0], [0], [1], [0, 0, 1, 1], [], []>} : vector<40x64xbf16>, vector<64x32xbf16>, vector<40x32xf32> -> vector<40x32xf32>
    %24 = vector.broadcast %20 : vector<1x32xf32> to vector<40x32xf32>
    %25 = arith.addf %23, %24 : vector<40x32xf32>
    %cst_25 = arith.constant 0.000000e+00 : f32
    %26 = vector.broadcast %cst_25 : f32 to vector<40x32xf32>
    %27 = arith.cmpf oge, %25, %26 : vector<40x32xf32>
    %cst_26 = arith.constant 0.00999999977 : f32
    %28 = vector.broadcast %cst_26 : f32 to vector<40x32xf32>
    %29 = arith.mulf %28, %25 : vector<40x32xf32>
    %30 = arith.select %27, %25, %29 : vector<40x32xi1>, vector<40x32xf32>
    %31 = arith.truncf %30 : vector<40x32xf32> to vector<40x32xbf16>
    %cst_27 = arith.constant dense<0.000000e+00> : vector<40x32xf32>
    %32 = tpu.matmul %31, %21, %cst_27 {dimension_numbers = #tpu.dot_dimension_numbers<[1], [0], [0], [1], [0, 0, 1, 1], [], []>} : vector<40x32xbf16>, vector<32x32xbf16>, vector<40x32xf32> -> vector<40x32xf32>
    %33 = vector.broadcast %22 : vector<1x32xf32> to vector<40x32xf32>
    %34 = arith.addf %32, %33 : vector<40x32xf32>
    %c0_28 = arith.constant 0 : index
    %c0_29 = arith.constant 0 : index
    %35 = vector.load %arg12[%c0_28, %c0_29] : memref<40x32xf32, #tpu.memory_space<vmem>>, vector<40x32xf32>
    tpu.vector_store %arg12[%c0_28, %c0_29], %34 {strides = array<i32>} : memref<40x32xf32, #tpu.memory_space<vmem>>, vector<40x32xf32>,
    return
  }
  func.func @transform_0(%arg0: i32) -> (i32, i32) {
    %c0_i32 = arith.constant 0 : i32
    %c0_i32_0 = arith.constant 0 : i32
    return %arg0, %c0_i32 : i32, i32
  }
  func.func @transform_1(%arg0: i32) -> (i32, i32) {
    %c0_i32 = arith.constant 0 : i32
    %c0_i32_0 = arith.constant 0 : i32
    return %arg0, %c0_i32 : i32, i32
  }
  func.func @transform_2(%arg0: i32) -> (i32, i32) {
    %c0_i32 = arith.constant 0 : i32
    %c0_i32_0 = arith.constant 0 : i32
    %c0_i32_1 = arith.constant 0 : i32
    return %c0_i32, %c0_i32_0 : i32, i32
  }
  func.func @transform_3(%arg0: i32) -> (i32, i32) {
    %c0_i32 = arith.constant 0 : i32
    %c0_i32_0 = arith.constant 0 : i32
    %c0_i32_1 = arith.constant 0 : i32
    return %c0_i32, %c0_i32_0 : i32, i32
  }
  func.func @transform_4(%arg0: i32) -> (i32, i32) {
    %c0_i32 = arith.constant 0 : i32
    %c0_i32_0 = arith.constant 0 : i32
    %c0_i32_1 = arith.constant 0 : i32
    return %c0_i32, %c0_i32_0 : i32, i32
  }
  func.func @transform_5(%arg0: i32) -> (i32, i32) {
    %c0_i32 = arith.constant 0 : i32
    %c0_i32_0 = arith.constant 0 : i32
    %c0_i32_1 = arith.constant 0 : i32
    return %c0_i32, %c0_i32_0 : i32, i32
  }
  func.func @transform_6(%arg0: i32) -> (i32, i32) {
    %c0_i32 = arith.constant 0 : i32
    %c0_i32_0 = arith.constant 0 : i32
    %c0_i32_1 = arith.constant 0 : i32
    return %c0_i32, %c0_i32_0 : i32, i32
  }
  func.func @transform_7(%arg0: i32) -> (i32, i32) {
    %c0_i32 = arith.constant 0 : i32
    %c0_i32_0 = arith.constant 0 : i32
    %c0_i32_1 = arith.constant 0 : i32
    return %c0_i32, %c0_i32_0 : i32, i32
  }
  func.func @transform_8(%arg0: i32) -> (i32, i32) {
    %c0_i32 = arith.constant 0 : i32
    %c0_i32_0 = arith.constant 0 : i32
    %c0_i32_1 = arith.constant 0 : i32
    return %c0_i32, %c0_i32_0 : i32, i32
  }
  func.func @transform_9(%arg0: i32) -> (i32, i32) {
    %c0_i32 = arith.constant 0 : i32
    %c0_i32_0 = arith.constant 0 : i32
    %c0_i32_1 = arith.constant 0 : i32
    return %c0_i32, %c0_i32_0 : i32, i32
  }
  func.func @transform_10(%arg0: i32) -> (i32, i32) {
    %c0_i32 = arith.constant 0 : i32
    %c0_i32_0 = arith.constant 0 : i32
    return %arg0, %c0_i32 : i32, i32
  }
  func.func @transform_11(%arg0: i32) -> (i32, i32) {
    %c0_i32 = arith.constant 0 : i32
    %c0_i32_0 = arith.constant 0 : i32
    return %arg0, %c0_i32 : i32, i32
  }
}

</mosaic_0001>

<llo_original>
// kernel: tpu_custom_call.1
$region0: #{tpu_custom_call.1}
  #allocation0 [shape = 'u32[]', space=smem, size = 0x4, offset = 0x4, fixed_abs, tag = 'smem constant byte address 0x4 - core index']
  #allocation1 [shape = 'u32[144,128]{1,0:T(1,128)}', space=vmem, size = 0x12000, scoped, tag = 'internal scratch']
  %s0 = inlined_call_operand.vmem [shape: bf16[40,48], index: 0, kind: input, shape index: {}]
  %s1 = inlined_call_operand.vmem [shape: bf16[40,64], index: 1, kind: input, shape index: {}]
  %s2 = inlined_call_operand.vmem [shape: bf16[48,32], index: 2, kind: input, shape index: {}]
  %s3 = inlined_call_operand.vmem [shape: f32[1,32], index: 3, kind: input, shape index: {}]
  %s4 = inlined_call_operand.vmem [shape: bf16[32,32], index: 4, kind: input, shape index: {}]
  %s5 = inlined_call_operand.vmem [shape: f32[1,32], index: 5, kind: input, shape index: {}]
  %s6 = inlined_call_operand.vmem [shape: bf16[64,32], index: 6, kind: input, shape index: {}]
  %s7 = inlined_call_operand.vmem [shape: f32[1,32], index: 7, kind: input, shape index: {}]
  %s8 = inlined_call_operand.vmem [shape: bf16[32,32], index: 8, kind: input, shape index: {}]
  %s9 = inlined_call_operand.vmem [shape: f32[1,32], index: 9, kind: input, shape index: {}]
  %s10 = inlined_call_operand.vmem [shape: f32[40,32], index: 10, kind: output, shape index: {0}]
  %s11 = inlined_call_operand.vmem [shape: f32[40,32], index: 11, kind: output, shape index: {1}]
  %12 = xla_tuple %s10, %s11
  %s13 = sld [smem:[#allocation0]]
  $region58: #{tpu_custom_call.1} parent=0
    _
  %s15 = ssub.s32 1, %s13
  %s16 = scalar_select 0, %s15, %s13
  // Predicated region
  $region2: #{tpu_custom_call.1} parent=0 // pred_check
    _
  $region3: #{tpu_custom_call.1} parent=0 // pred_check_branch
    %18 = sbr.rel (0) target = $region5
  $region4: #{tpu_custom_call.1} parent=0 // pred_region
    _
  $region5: #{tpu_custom_call.1} parent=0 // pred_fallthru
    _
  // Predicated region
  $region6: #{tpu_custom_call.1} parent=0 // pred_check
    _
  $region7: #{tpu_custom_call.1} parent=0 // pred_check_branch
    %20 = sbr.rel (0) target = $region9
  $region8: #{tpu_custom_call.1} parent=0 // pred_region
    _
  $region9: #{tpu_custom_call.1} parent=0 // pred_fallthru
    _
  // Predicated region
  $region10: #{tpu_custom_call.1} parent=0 // pred_check
    _
  $region11: #{tpu_custom_call.1} parent=0 // pred_check_branch
    %22 = sbr.rel (0) target = $region13
  $region12: #{tpu_custom_call.1} parent=0 // pred_region
    _
  $region13: #{tpu_custom_call.1} parent=0 // pred_fallthru
    _
  // Predicated region
  $region14: #{tpu_custom_call.1} parent=0 // pred_check
    _
  $region15: #{tpu_custom_call.1} parent=0 // pred_check_branch
    %24 = sbr.rel (0) target = $region17
  $region16: #{tpu_custom_call.1} parent=0 // pred_region
    _
  $region17: #{tpu_custom_call.1} parent=0 // pred_fallthru
    _
  // Predicated region
  $region18: #{tpu_custom_call.1} parent=0 // pred_check
    _
  $region19: #{tpu_custom_call.1} parent=0 // pred_check_branch
    %26 = sbr.rel (0) target = $region21
  $region20: #{tpu_custom_call.1} parent=0 // pred_region
    _
  $region21: #{tpu_custom_call.1} parent=0 // pred_fallthru
    _
  // Predicated region
  $region22: #{tpu_custom_call.1} parent=0 // pred_check
    _
  $region23: #{tpu_custom_call.1} parent=0 // pred_check_branch
    %28 = sbr.rel (0) target = $region25
  $region24: #{tpu_custom_call.1} parent=0 // pred_region
    _
  $region25: #{tpu_custom_call.1} parent=0 // pred_fallthru
    _
  // Predicated region
  $region26: #{tpu_custom_call.1} parent=0 // pred_check
    _
  $region27: #{tpu_custom_call.1} parent=0 // pred_check_branch
    %30 = sbr.rel (0) target = $region29
  $region28: #{tpu_custom_call.1} parent=0 // pred_region
    _
  $region29: #{tpu_custom_call.1} parent=0 // pred_fallthru
    _
  // Predicated region
  $region30: #{tpu_custom_call.1} parent=0 // pred_check
    _
  $region31: #{tpu_custom_call.1} parent=0 // pred_check_branch
    %32 = sbr.rel (0) target = $region33
  $region32: #{tpu_custom_call.1} parent=0 // pred_region
    _
  $region33: #{tpu_custom_call.1} parent=0 // pred_fallthru
    _
  // Predicated region
  $region34: #{tpu_custom_call.1} parent=0 // pred_check
    _
  $region35: #{tpu_custom_call.1} parent=0 // pred_check_branch
    %34 = sbr.rel (0) target = $region37
  $region36: #{tpu_custom_call.1} parent=0 // pred_region
    _
  $region37: #{tpu_custom_call.1} parent=0 // pred_fallthru
    _
  // Predicated region
  $region38: #{tpu_custom_call.1} parent=0 // pred_check
    _
  $region39: #{tpu_custom_call.1} parent=0 // pred_check_branch
    %36 = sbr.rel (0) target = $region41
  $region40: #{tpu_custom_call.1} parent=0 // pred_region
    _
  $region41: #{tpu_custom_call.1} parent=0 // pred_fallthru
    _
  %v38 = vld [vmem:[%s0] sm:$0xf]
  %v39 = vld [vmem:[%s0 + $0x4] sm:$0xf]
  %v40 = vld [vmem:[%s0 + $0x8] sm:$0xf]
  %v41 = vld [vmem:[%s0 + $0xc] sm:$0xf]
  %v42 = vld [vmem:[%s0 + $0x10] sm:$0xf]
  %v43 = vld [vmem:[%s2] sm:$0xf]
  %v44 = vld [vmem:[%s2 + $0x4] sm:$0xf]
  %v45 = vld [vmem:[%s2 + $0x8] sm:$0xf]
  %v46 = vld [vmem:[%s2 + $0xc] sm:$0xf]
  %v47 = vld [vmem:[%s2 + $0x10] sm:$0xf]
  %v48 = vld [vmem:[%s2 + $0x14] sm:$0xf]
  %v49 = vld [vmem:[%s3] sm:$0x1]
  %v50 = vld [vmem:[%s4] sm:$0xf]
  %v51 = vld [vmem:[%s4 + $0x4] sm:$0xf]
  %v52 = vld [vmem:[%s4 + $0x8] sm:$0xf]
  %v53 = vld [vmem:[%s4 + $0xc] sm:$0xf]
  %v54 = vld [vmem:[%s5] sm:$0x1]
  %v56 = vlaneseq
  %v57 = vshrl.u32 %v56, 7
  %v58 = vsub.s32 0, %v57
  %v59 = vrot.slane %v49, %v58
  %v66 = vunpack.c.l.b16 %v38
  %v67 = vunpack.c.l.b16 %v39
  %v68 = vunpack.c.l.b16 %v40
  %v69 = vunpack.c.l.b16 %v41
  %v70 = vunpack.c.l.b16 %v42
  %v71 = vpack.c.b16 %v67, %v66
  %v72 = vpack.c.b16 %v69, %v68
  %v73 = vpack.c.b16 %v70, %v70
  %v80 = vunpack.c.l.b16 %v43
  %v81 = vunpack.c.l.b16 %v44
  %v82 = vunpack.c.l.b16 %v45
  %v83 = vunpack.c.l.b16 %v46
  %v84 = vunpack.c.l.b16 %v47
  %v85 = vunpack.c.l.b16 %v48
  %v86 = vpack.c.b16 %v81, %v80
  %v87 = vpack.c.b16 %v83, %v82
  %v88 = vpack.c.b16 %v85, %v84
  %vm92 = vcmask 392192
  %v94 = vsel %vm92, %v71, 0
  %v97 = vsel %vm92, %v72, 0
  %v100 = vsel %vm92, %v73, 0
  %102 = vmatprep.subr.bf16.mxu0 0
  %103 = vmatpush1.bf16.msra.mxu0 %v86
  %104 = vmatprep.subr.bf16.mxu0 0
  %105 = vmatpush1.bf16.msra.mxu0 %v87
  %106 = vmatprep.subr.bf16.mxu0 0
  %107 = vmatpush1.bf16.msra.mxu0 %v88
  %108 = vmatprep.subr.bf16.mxu0 0
  %109 = vmatpush1.bf16.msra.mxu0 0
  %110 = vmatprep.subr.bf16.mxu0 0
  %111 = vmatpush1.bf16.msra.mxu0 0
  %112 = vmatprep.subr.bf16.mxu0 0
  %113 = vmatpush1.bf16.msra.mxu0 0
  %114 = vmatprep.subr.bf16.mxu0 0
  %115 = vmatpush1.bf16.msra.mxu0 0
  %116 = vmatprep.subr.bf16.mxu0 0
  %117 = vmatpush1.bf16.msra.mxu0 0
  %118 = vmatprep.subr.bf16.mxu0 0
  %119 = vmatpush1.bf16.msra.mxu0 0
  %120 = vmatprep.subr.bf16.mxu0 0
  %121 = vmatpush1.bf16.msra.mxu0 0
  %122 = vmatprep.subr.bf16.mxu0 0
  %123 = vmatpush1.bf16.msra.mxu0 0
  %124 = vmatprep.subr.bf16.mxu0 0
  %125 = vmatpush1.bf16.msra.mxu0 0
  %126 = vmatprep.subr.bf16.mxu0 0
  %127 = vmatpush1.bf16.msra.mxu0 0
  %128 = vmatprep.subr.bf16.mxu0 0
  %129 = vmatpush1.bf16.msra.mxu0 0
  %130 = vmatprep.subr.bf16.mxu0 0
  %131 = vmatpush1.bf16.msra.mxu0 0
  %132 = vmatprep.subr.bf16.mxu0 0
  %133 = vmatpush1.bf16.msra.mxu0 0
  %134 = vmatprep.mubr.bf16.mxu0 0
  %135 = vmatmul.mubr.bf16.gmra.mrb[0].mxu0 %v94
  %v136 = vpop.f32.mrb[0].mxu0
  %v137 = vadd.f32 %v59, %v136
  %v138 = vpop.f32.mrb[0].mxu0
  %v139 = vpop.f32.mrb[0].mxu0
  %v140 = vadd.f32 %v59, %v139
  %v141 = vpop.f32.mrb[0].mxu0
  %142 = vmatprep.mubr.bf16.mxu0 0
  %143 = vmatmul.mubr.bf16.gmra.mrb[0].mxu0 %v97
  %v144 = vpop.f32.mrb[0].mxu0
  %v145 = vadd.f32 %v59, %v144
  %v146 = vpop.f32.mrb[0].mxu0
  %v147 = vpop.f32.mrb[0].mxu0
  %v148 = vadd.f32 %v59, %v147
  %v149 = vpop.f32.mrb[0].mxu0
  %150 = vmatprep.mubr.bf16.mxu0 0
  %151 = vmatmul.mubr.bf16.gmra.mrb[0].mxu0 %v100
  %v152 = vpop.f32.mrb[0].mxu0
  %v153 = vadd.f32 %v59, %v152
  %v154 = vpop.f32.mrb[0].mxu0
  %v155 = vpop.f32.mrb[0].mxu0
  %v156 = vpop.f32.mrb[0].mxu0
  %157 = vdwg.mxu0
  %vm158 = vcmp.ge.f32.partialorder %v137, 0.0
  %vm159 = vcmp.ge.f32.partialorder %v140, 0.0
  %vm160 = vcmp.ge.f32.partialorder %v145, 0.0
  %vm161 = vcmp.ge.f32.partialorder %v148, 0.0
  %vm162 = vcmp.ge.f32.partialorder %v153, 0.0
  %v163 = vmul.f32 %v137, 0.01
  %v164 = vmul.f32 %v140, 0.01
  %v165 = vmul.f32 %v145, 0.01
  %v166 = vmul.f32 %v148, 0.01
  %v167 = vmul.f32 %v153, 0.01
  %v168 = vsel %vm158, %v137, %v163
  %v169 = vsel %vm159, %v140, %v164
  %v170 = vsel %vm160, %v145, %v165
  %v171 = vsel %vm161, %v148, %v166
  %v172 = vsel %vm162, %v153, %v167
  %v173 = vpack.c.bf16 %v169, %v168
  %v174 = vpack.c.bf16 %v171, %v170
  %v175 = vpack.c.bf16 %v172, %v172
  %v177 = vlaneseq
  %v178 = vshrl.u32 %v177, 7
  %v179 = vsub.s32 0, %v178
  %v180 = vrot.slane %v54, %v179
  %v186 = vunpack.c.l.b16 %v50
  %v187 = vunpack.c.l.b16 %v51
  %v188 = vunpack.c.l.b16 %v52
  %v189 = vunpack.c.l.b16 %v53
  %v190 = vpack.c.b16 %v187, %v186
  %v191 = vpack.c.b16 %v189, %v188
  %vm194 = vcmask 261120
  %v196 = vsel %vm194, %v173, 0
  %v199 = vsel %vm194, %v174, 0
  %v202 = vsel %vm194, %v175, 0
  %204 = vmatprep.subr.bf16.mxu0 0
  %205 = vmatpush1.bf16.msra.mxu0 %v190
  %206 = vmatprep.subr.bf16.mxu0 0
  %207 = vmatpush1.bf16.msra.mxu0 %v191
  %208 = vmatprep.subr.bf16.mxu0 0
  %209 = vmatpush1.bf16.msra.mxu0 0
  %210 = vmatprep.subr.bf16.mxu0 0
  %211 = vmatpush1.bf16.msra.mxu0 0
  %212 = vmatprep.subr.bf16.mxu0 0
  %213 = vmatpush1.bf16.msra.mxu0 0
  %214 = vmatprep.subr.bf16.mxu0 0
  %215 = vmatpush1.bf16.msra.mxu0 0
  %216 = vmatprep.subr.bf16.mxu0 0
  %217 = vmatpush1.bf16.msra.mxu0 0
  %218 = vmatprep.subr.bf16.mxu0 0
  %219 = vmatpush1.bf16.msra.mxu0 0
  %220 = vmatprep.subr.bf16.mxu0 0
  %221 = vmatpush1.bf16.msra.mxu0 0
  %222 = vmatprep.subr.bf16.mxu0 0
  %223 = vmatpush1.bf16.msra.mxu0 0
  %224 = vmatprep.subr.bf16.mxu0 0
  %225 = vmatpush1.bf16.msra.mxu0 0
  %226 = vmatprep.subr.bf16.mxu0 0
  %227 = vmatpush1.bf16.msra.mxu0 0
  %228 = vmatprep.subr.bf16.mxu0 0
  %229 = vmatpush1.bf16.msra.mxu0 0
  %230 = vmatprep.subr.bf16.mxu0 0
  %231 = vmatpush1.bf16.msra.mxu0 0
  %232 = vmatprep.subr.bf16.mxu0 0
  %233 = vmatpush1.bf16.msra.mxu0 0
  %234 = vmatprep.subr.bf16.mxu0 0
  %235 = vmatpush1.bf16.msra.mxu0 0
  %236 = vmatprep.mubr.bf16.mxu0 0
  %237 = vmatmul.mubr.bf16.gmra.mrb[0].mxu0 %v196
  %v238 = vpop.f32.mrb[0].mxu0
  %v239 = vadd.f32 %v180, %v238
  %v240 = vpop.f32.mrb[0].mxu0
  %v241 = vpop.f32.mrb[0].mxu0
  %v242 = vadd.f32 %v180, %v241
  %v243 = vpop.f32.mrb[0].mxu0
  %244 = vmatprep.mubr.bf16.mxu0 0
  %245 = vmatmul.mubr.bf16.gmra.mrb[0].mxu0 %v199
  %v246 = vpop.f32.mrb[0].mxu0
  %v247 = vadd.f32 %v180, %v246
  %v248 = vpop.f32.mrb[0].mxu0
  %v249 = vpop.f32.mrb[0].mxu0
  %v250 = vadd.f32 %v180, %v249
  %v251 = vpop.f32.mrb[0].mxu0
  %252 = vmatprep.mubr.bf16.mxu0 0
  %253 = vmatmul.mubr.bf16.gmra.mrb[0].mxu0 %v202
  %v254 = vpop.f32.mrb[0].mxu0
  %v255 = vadd.f32 %v180, %v254
  %v256 = vpop.f32.mrb[0].mxu0
  %v257 = vpop.f32.mrb[0].mxu0
  %v258 = vpop.f32.mrb[0].mxu0
  %259 = vdwg.mxu0
  %260 = vst.msk [vmem:[%s10] sm:$0xff] %vm194, %v239
  %261 = vst.msk [vmem:[%s10 + $0x8] sm:$0xff] %vm194, %v242
  %262 = vst.msk [vmem:[%s10 + $0x10] sm:$0xff] %vm194, %v247
  %263 = vst.msk [vmem:[%s10 + $0x18] sm:$0xff] %vm194, %v250
  %264 = vst.msk [vmem:[%s10 + $0x20] sm:$0xff] %vm194, %v255
  %v265 = vld [vmem:[%s1] sm:$0xf]
  %v266 = vld [vmem:[%s1 + $0x4] sm:$0xf]
  %v267 = vld [vmem:[%s1 + $0x8] sm:$0xf]
  %v268 = vld [vmem:[%s1 + $0xc] sm:$0xf]
  %v269 = vld [vmem:[%s1 + $0x10] sm:$0xf]
  %v270 = vld [vmem:[%s6] sm:$0xf]
  %v271 = vld [vmem:[%s6 + $0x4] sm:$0xf]
  %v272 = vld [vmem:[%s6 + $0x8] sm:$0xf]
  %v273 = vld [vmem:[%s6 + $0xc] sm:$0xf]
  %v274 = vld [vmem:[%s6 + $0x10] sm:$0xf]
  %v275 = vld [vmem:[%s6 + $0x14] sm:$0xf]
  %v276 = vld [vmem:[%s6 + $0x18] sm:$0xf]
  %v277 = vld [vmem:[%s6 + $0x1c] sm:$0xf]
  %v278 = vld [vmem:[%s7] sm:$0x1]
  %v279 = vld [vmem:[%s8] sm:$0xf]
  %v280 = vld [vmem:[%s8 + $0x4] sm:$0xf]
  %v281 = vld [vmem:[%s8 + $0x8] sm:$0xf]
  %v282 = vld [vmem:[%s8 + $0xc] sm:$0xf]
  %v283 = vld [vmem:[%s9] sm:$0x1]
  %v285 = vlaneseq
  %v286 = vshrl.u32 %v285, 7
  %v287 = vsub.s32 0, %v286
  %v288 = vrot.slane %v278, %v287
  %v295 = vunpack.c.l.b16 %v265
  %v296 = vunpack.c.l.b16 %v266
  %v297 = vunpack.c.l.b16 %v267
  %v298 = vunpack.c.l.b16 %v268
  %v299 = vunpack.c.l.b16 %v269
  %v300 = vpack.c.b16 %v296, %v295
  %v301 = vpack.c.b16 %v298, %v297
  %v302 = vpack.c.b16 %v299, %v299
  %v311 = vunpack.c.l.b16 %v270
  %v312 = vunpack.c.l.b16 %v271
  %v313 = vunpack.c.l.b16 %v272
  %v314 = vunpack.c.l.b16 %v273
  %v315 = vunpack.c.l.b16 %v274
  %v316 = vunpack.c.l.b16 %v275
  %v317 = vunpack.c.l.b16 %v276
  %v318 = vunpack.c.l.b16 %v277
  %v319 = vpack.c.b16 %v312, %v311
  %v320 = vpack.c.b16 %v314, %v313
  %v321 = vpack.c.b16 %v316, %v315
  %v322 = vpack.c.b16 %v318, %v317
  %vm327 = vcmask 523264
  %v329 = vsel %vm327, %v300, 0
  %v332 = vsel %vm327, %v301, 0
  %v335 = vsel %vm327, %v302, 0
  %337 = vmatprep.subr.bf16.mxu0 0
  %338 = vmatpush1.bf16.msra.mxu0 %v319
  %339 = vmatprep.subr.bf16.mxu0 0
  %340 = vmatpush1.bf16.msra.mxu0 %v320
  %341 = vmatprep.subr.bf16.mxu0 0
  %342 = vmatpush1.bf16.msra.mxu0 %v321
  %343 = vmatprep.subr.bf16.mxu0 0
  %344 = vmatpush1.bf16.msra.mxu0 %v322
  %345 = vmatprep.subr.bf16.mxu0 0
  %346 = vmatpush1.bf16.msra.mxu0 0
  %347 = vmatprep.subr.bf16.mxu0 0
  %348 = vmatpush1.bf16.msra.mxu0 0
  %349 = vmatprep.subr.bf16.mxu0 0
  %350 = vmatpush1.bf16.msra.mxu0 0
  %351 = vmatprep.subr.bf16.mxu0 0
  %352 = vmatpush1.bf16.msra.mxu0 0
  %353 = vmatprep.subr.bf16.mxu0 0
  %354 = vmatpush1.bf16.msra.mxu0 0
  %355 = vmatprep.subr.bf16.mxu0 0
  %356 = vmatpush1.bf16.msra.mxu0 0
  %357 = vmatprep.subr.bf16.mxu0 0
  %358 = vmatpush1.bf16.msra.mxu0 0
  %359 = vmatprep.subr.bf16.mxu0 0
  %360 = vmatpush1.bf16.msra.mxu0 0
  %361 = vmatprep.subr.bf16.mxu0 0
  %362 = vmatpush1.bf16.msra.mxu0 0
  %363 = vmatprep.subr.bf16.mxu0 0
  %364 = vmatpush1.bf16.msra.mxu0 0
  %365 = vmatprep.subr.bf16.mxu0 0
  %366 = vmatpush1.bf16.msra.mxu0 0
  %367 = vmatprep.subr.bf16.mxu0 0
  %368 = vmatpush1.bf16.msra.mxu0 0
  %369 = vmatprep.mubr.bf16.mxu0 0
  %370 = vmatmul.mubr.bf16.gmra.mrb[0].mxu0 %v329
  %v371 = vpop.f32.mrb[0].mxu0
  %v372 = vadd.f32 %v288, %v371
  %v373 = vpop.f32.mrb[0].mxu0
  %v374 = vpop.f32.mrb[0].mxu0
  %v375 = vadd.f32 %v288, %v374
  %v376 = vpop.f32.mrb[0].mxu0
  %377 = vmatprep.mubr.bf16.mxu0 0
  %378 = vmatmul.mubr.bf16.gmra.mrb[0].mxu0 %v332
  %v379 = vpop.f32.mrb[0].mxu0
  %v380 = vadd.f32 %v288, %v379
  %v381 = vpop.f32.mrb[0].mxu0
  %v382 = vpop.f32.mrb[0].mxu0
  %v383 = vadd.f32 %v288, %v382
  %v384 = vpop.f32.mrb[0].mxu0
  %385 = vmatprep.mubr.bf16.mxu0 0
  %386 = vmatmul.mubr.bf16.gmra.mrb[0].mxu0 %v335
  %v387 = vpop.f32.mrb[0].mxu0
  %v388 = vadd.f32 %v288, %v387
  %v389 = vpop.f32.mrb[0].mxu0
  %v390 = vpop.f32.mrb[0].mxu0
  %v391 = vpop.f32.mrb[0].mxu0
  %392 = vdwg.mxu0
  %vm393 = vcmp.ge.f32.partialorder %v372, 0.0
  %vm394 = vcmp.ge.f32.partialorder %v375, 0.0
  %vm395 = vcmp.ge.f32.partialorder %v380, 0.0
  %vm396 = vcmp.ge.f32.partialorder %v383, 0.0
  %vm397 = vcmp.ge.f32.partialorder %v388, 0.0
  %v398 = vmul.f32 %v372, 0.01
  %v399 = vmul.f32 %v375, 0.01
  %v400 = vmul.f32 %v380, 0.01
  %v401 = vmul.f32 %v383, 0.01
  %v402 = vmul.f32 %v388, 0.01
  %v403 = vsel %vm393, %v372, %v398
  %v404 = vsel %vm394, %v375, %v399
  %v405 = vsel %vm395, %v380, %v400
  %v406 = vsel %vm396, %v383, %v401
  %v407 = vsel %vm397, %v388, %v402
  %v408 = vpack.c.bf16 %v404, %v403
  %v409 = vpack.c.bf16 %v406, %v405
  %v410 = vpack.c.bf16 %v407, %v407
  %v412 = vlaneseq
  %v413 = vshrl.u32 %v412, 7
  %v414 = vsub.s32 0, %v413
  %v415 = vrot.slane %v283, %v414
  %v421 = vunpack.c.l.b16 %v279
  %v422 = vunpack.c.l.b16 %v280
  %v423 = vunpack.c.l.b16 %v281
  %v424 = vunpack.c.l.b16 %v282
  %v425 = vpack.c.b16 %v422, %v421
  %v426 = vpack.c.b16 %v424, %v423
  %v430 = vsel %vm194, %v408, 0
  %v433 = vsel %vm194, %v409, 0
  %v436 = vsel %vm194, %v410, 0
  %438 = vmatprep.subr.bf16.mxu0 0
  %439 = vmatpush1.bf16.msra.mxu0 %v425
  %440 = vmatprep.subr.bf16.mxu0 0
  %441 = vmatpush1.bf16.msra.mxu0 %v426
  %442 = vmatprep.subr.bf16.mxu0 0
  %443 = vmatpush1.bf16.msra.mxu0 0
  %444 = vmatprep.subr.bf16.mxu0 0
  %445 = vmatpush1.bf16.msra.mxu0 0
  %446 = vmatprep.subr.bf16.mxu0 0
  %447 = vmatpush1.bf16.msra.mxu0 0
  %448 = vmatprep.subr.bf16.mxu0 0
  %449 = vmatpush1.bf16.msra.mxu0 0
  %450 = vmatprep.subr.bf16.mxu0 0
  %451 = vmatpush1.bf16.msra.mxu0 0
  %452 = vmatprep.subr.bf16.mxu0 0
  %453 = vmatpush1.bf16.msra.mxu0 0
  %454 = vmatprep.subr.bf16.mxu0 0
  %455 = vmatpush1.bf16.msra.mxu0 0
  %456 = vmatprep.subr.bf16.mxu0 0
  %457 = vmatpush1.bf16.msra.mxu0 0
  %458 = vmatprep.subr.bf16.mxu0 0
  %459 = vmatpush1.bf16.msra.mxu0 0
  %460 = vmatprep.subr.bf16.mxu0 0
  %461 = vmatpush1.bf16.msra.mxu0 0
  %462 = vmatprep.subr.bf16.mxu0 0
  %463 = vmatpush1.bf16.msra.mxu0 0
  %464 = vmatprep.subr.bf16.mxu0 0
  %465 = vmatpush1.bf16.msra.mxu0 0
  %466 = vmatprep.subr.bf16.mxu0 0
  %467 = vmatpush1.bf16.msra.mxu0 0
  %468 = vmatprep.subr.bf16.mxu0 0
  %469 = vmatpush1.bf16.msra.mxu0 0
  %470 = vmatprep.mubr.bf16.mxu0 0
  %471 = vmatmul.mubr.bf16.gmra.mrb[0].mxu0 %v430
  %v472 = vpop.f32.mrb[0].mxu0
  %v473 = vadd.f32 %v415, %v472
  %v474 = vpop.f32.mrb[0].mxu0
  %v475 = vpop.f32.mrb[0].mxu0
  %v476 = vadd.f32 %v415, %v475
  %v477 = vpop.f32.mrb[0].mxu0
  %478 = vmatprep.mubr.bf16.mxu0 0
  %479 = vmatmul.mubr.bf16.gmra.mrb[0].mxu0 %v433
  %v480 = vpop.f32.mrb[0].mxu0
  %v481 = vadd.f32 %v415, %v480
  %v482 = vpop.f32.mrb[0].mxu0
  %v483 = vpop.f32.mrb[0].mxu0
  %v484 = vadd.f32 %v415, %v483
  %v485 = vpop.f32.mrb[0].mxu0
  %486 = vmatprep.mubr.bf16.mxu0 0
  %487 = vmatmul.mubr.bf16.gmra.mrb[0].mxu0 %v436
  %v488 = vpop.f32.mrb[0].mxu0
  %v489 = vadd.f32 %v415, %v488
  %v490 = vpop.f32.mrb[0].mxu0
  %v491 = vpop.f32.mrb[0].mxu0
  %v492 = vpop.f32.mrb[0].mxu0
  %493 = vdwg.mxu0
  %494 = vst.msk [vmem:[%s11] sm:$0xff] %vm194, %v473
  %495 = vst.msk [vmem:[%s11 + $0x8] sm:$0xff] %vm194, %v476
  %496 = vst.msk [vmem:[%s11 + $0x10] sm:$0xff] %vm194, %v481
  %497 = vst.msk [vmem:[%s11 + $0x18] sm:$0xff] %vm194, %v484
  %498 = vst.msk [vmem:[%s11 + $0x20] sm:$0xff] %vm194, %v489
  // Predicated region
  $region42: #{tpu_custom_call.1} parent=0 // pred_check
    _
  $region43: #{tpu_custom_call.1} parent=0 // pred_check_branch
    %500 = sbr.rel (0) target = $region45
  $region44: #{tpu_custom_call.1} parent=0 // pred_region
    _
  $region45: #{tpu_custom_call.1} parent=0 // pred_fallthru
    _
  // Predicated region
  $region46: #{tpu_custom_call.1} parent=0 // pred_check
    _
  $region47: #{tpu_custom_call.1} parent=0 // pred_check_branch
    %502 = sbr.rel (0) target = $region49
  $region48: #{tpu_custom_call.1} parent=0 // pred_region
    _
  $region49: #{tpu_custom_call.1} parent=0 // pred_fallthru
    _
  // Predicated region
  $region50: #{tpu_custom_call.1} parent=0 // pred_check
    _
  $region51: #{tpu_custom_call.1} parent=0 // pred_check_branch
    %504 = sbr.rel (0) target = $region53
  $region52: #{tpu_custom_call.1} parent=0 // pred_region
    _
  $region53: #{tpu_custom_call.1} parent=0 // pred_fallthru
    _
  // Predicated region
  $region54: #{tpu_custom_call.1} parent=0 // pred_check
    _
  $region55: #{tpu_custom_call.1} parent=0 // pred_check_branch
    %506 = sbr.rel (0) target = $region57
  $region56: #{tpu_custom_call.1} parent=0 // pred_region
    _
  $region57: #{tpu_custom_call.1} parent=0 // pred_fallthru
    _

</llo_original>
